<compile_context>
chip_gen: v7x
topology: tpu7x:2x2x1
jax: 0.10.0
libtpu: 0.0.40
codegen_flags: <defaults>
</compile_context>

<pallas_src>
import functools

import jax
import jax.numpy as jnp
from jax.experimental import pallas as pl
from jax.experimental.pallas import tpu as pltpu


# ----------------------------------------------------------------------------
# Kernels
# ----------------------------------------------------------------------------
def _pool_single_pass_kernel(x_ref, out_ref, *, inv_hw):
    # x_ref:   (n_tile, c_tile, HW)  -- the block's last dim equals the logical
    #          H*W, so Mosaic masks any vreg lane padding itself (no explicit
    #          masking, no accumulator needed).
    # out_ref: (n_tile, 2, c_tile)   -- row 0 = avg, row 1 = max, C lane-dense.
    x = x_ref[...]
    s = jnp.sum(x.astype(jnp.float32), axis=-1) * inv_hw       # (n_tile, c_tile)
    m = jnp.max(x, axis=-1).astype(jnp.float32)                # (n_tile, c_tile)
    out_ref[:, 0, :] = s.astype(out_ref.dtype)
    out_ref[:, 1, :] = m.astype(out_ref.dtype)


def _pool_accum_kernel(x_ref, out_ref, sum_ref, max_ref, *,
                       inv_hw, hw_total, hw_tile, mask_last, neg_ident):
    # x_ref:   (1, c_tile, hw_tile) input tile (C on sublanes, HW on lanes).
    # out_ref: (1, 2, c_tile)       lane-dense output (row 0 avg, row 1 max).
    # sum_ref: (1, c_tile) f32 running sum; max_ref: (1, c_tile) f32 running max.
    k = pl.program_id(2)
    last = pl.num_programs(2) - 1

    @pl.when(k == 0)
    def _init():
        sum_ref[...] = jnp.zeros_like(sum_ref)
        max_ref[...] = jnp.full_like(max_ref, -jnp.inf)

    x = x_ref[0]                                   # (c_tile, hw_tile)
    c_tile = x.shape[0]

    def _accumulate(x_sum, x_max):
        sum_ref[...] += jnp.sum(x_sum.astype(jnp.float32),
                                axis=-1).reshape(1, c_tile)
        max_ref[...] = jnp.maximum(
            max_ref[...],
            jnp.max(x_max, axis=-1).astype(jnp.float32).reshape(1, c_tile))

    if mask_last:
        # Only the ragged last HW tile sees block padding -> mask just there;
        # every other tile takes the unmasked fast path (add + max only).
        @pl.when(k != last)
        def _full_tiles():
            _accumulate(x, x)

        @pl.when(k == last)
        def _ragged_tile():
            lane = jax.lax.broadcasted_iota(jnp.int32, x.shape, 1)
            valid = lane < (hw_total - k * hw_tile)
            _accumulate(jnp.where(valid, x, jnp.zeros_like(x)),
                        jnp.where(valid, x, jnp.full_like(x, neg_ident)))
    else:
        _accumulate(x, x)

    @pl.when(k == last)
    def _finalize():
        avg = sum_ref[...] * jnp.float32(inv_hw)               # divide by TRUE H*W
        out_ref[...] = jnp.concatenate([avg, max_ref[...]], axis=0).reshape(
            1, 2, c_tile).astype(out_ref.dtype)


# ----------------------------------------------------------------------------
# Tiling heuristics
# ----------------------------------------------------------------------------
def _round_up(x, m):
    return ((x + m - 1) // m) * m


def _round_down(x, m):
    return (x // m) * m


def _cdiv(a, b):
    return -(-a // b)


def _largest_divisor_leq(n, cap):
    cap = max(1, min(n, cap))
    for d in range(cap, 0, -1):
        if n % d == 0:
            return d
    return 1


def _generation_targets():
    """(per-step input-block byte target, VMEM budget cap) per TPU generation."""
    try:
        vmem_phys = int(pltpu.get_tpu_info().vmem_capacity_bytes)
    except Exception:
        vmem_phys = 128 * 1024 * 1024          # conservative fallback
    if vmem_phys <= 64 * 1024 * 1024:
        # v7x-class: ~3.2 TB/s HBM -> bigger blocks to amortize the ~0.35us/step
        # cost, but only 64 MiB physical VMEM per TensorCore -> tight cap.
        return 8 * 1024 * 1024, 48 * 1024 * 1024
    # v5e / v6e: 4 MiB blocks already put per-step overhead <10% of DMA time and
    # stay well inside the scoped-VMEM window.
    return 4 * 1024 * 1024, 64 * 1024 * 1024


def _choose_tiles(n, c, hw, itemsize, target_bytes):
    """Pick (n_tile, c_tile, hw_tile) for the (N, C, HW)-shaped input.

    Constraints: c_tile is the output block's lane dim -> multiple of 128 or == C;
    hw_tile is the input block's lane dim -> multiple of 128 or == HW; n_tile is a
    leading dim (kept a divisor of N). Targets ~target_bytes of (padded) input per
    grid step so per-step pipeline overhead is amortized while double-buffered
    VMEM stays bounded.
    """
    sub_mult = 8 * max(1, 4 // itemsize)        # sublane packing multiple
    per_sample = _round_up(c, sub_mult) * _round_up(hw, 128) * itemsize

    if per_sample <= target_bytes:
        # A: one sample's (C, HW) slab is small -> batch samples into one block.
        n_tile = _largest_divisor_leq(n, target_bytes // per_sample)
        c_tile, hw_tile = c, hw
    elif c >= 256 and _round_up(hw, 128) * 128 * itemsize <= target_bytes:
        # B1: tile channels only; HW stays whole (single pass, no masking).
        n_tile = 1
        c_tile = min(c, max(128, _round_down(
            target_bytes // (_round_up(hw, 128) * itemsize), 128)))
        hw_tile = hw
    else:
        # B2: tile the HW reduction axis (ragged last tile is masked in-kernel).
        n_tile = 1
        c_tile = c
        if c >= 256 and c * 512 * itemsize > target_bytes:
            # Very wide channel dim: tile C too so HW tiles keep >= 512 lanes.
            c_tile = max(128, _round_down(target_bytes // (512 * itemsize), 128))
        hw_tile = max(128, _round_down(
            target_bytes // (_round_up(c_tile, sub_mult) * itemsize), 128))
        hw_tile = min(hw_tile, _round_down(hw, 128))   # hw >= 128 whenever B2 hits

    # Give multi-TensorCore chips (v7x) >= 2 steps on the parallel grid axes.
    if _cdiv(n, n_tile) * _cdiv(c, c_tile) == 1:
        if n > 1:
            n_tile = _largest_divisor_leq(n, n // 2)
        elif c_tile >= 256:
            c_tile = max(128, _round_down(c_tile // 2, 128))

    return n_tile, c_tile, hw_tile


# ----------------------------------------------------------------------------
# Wrapper
# ----------------------------------------------------------------------------
def adaptive_concat_pool2d(x):
    """x: (N, C, H, W) -> (N, 2*C, 1, 1), matching
    torch.cat([AdaptiveAvgPool2d((1,1))(x), AdaptiveMaxPool2d((1,1))(x)], 1)."""
    n, c, h, w = x.shape
    hw = h * w
    dtype = jnp.dtype(x.dtype)
    itemsize = dtype.itemsize
    x_flat = x.reshape(n, c, hw)

    target_bytes, vmem_cap = _generation_targets()
    n_tile, c_tile, hw_tile = _choose_tiles(n, c, hw, itemsize, target_bytes)

    num_n = _cdiv(n, n_tile)
    num_c = _cdiv(c, c_tile)
    num_k = _cdiv(hw, hw_tile)

    if num_k == 1:
        kernel = functools.partial(_pool_single_pass_kernel, inv_hw=1.0 / hw)
        scratch_shapes = []
    else:
        if jnp.issubdtype(dtype, jnp.floating):
            neg_ident = float("-inf")
        else:   # dtype-aware identity; sum still accumulates in f32
            neg_ident = int(jnp.iinfo(dtype).min)
        kernel = functools.partial(
            _pool_accum_kernel, inv_hw=1.0 / hw, hw_total=hw, hw_tile=hw_tile,
            mask_last=(hw % hw_tile) != 0, neg_ident=neg_ident)
        scratch_shapes = [pltpu.VMEM((1, c_tile), jnp.float32),
                          pltpu.VMEM((1, c_tile), jnp.float32)]

    # VMEM budget: double-buffered (padded) in/out blocks + scratch + headroom,
    # capped below every generation's window (incl. v7x's 64 MiB physical VMEM).
    sub_mult = 8 * max(1, 4 // itemsize)
    in_block = n_tile * _round_up(c_tile, sub_mult) * _round_up(hw_tile, 128) * itemsize
    out_block = n_tile * sub_mult * _round_up(c_tile, 128) * itemsize
    scratch_b = (2 * 8 * _round_up(c_tile, 128) * 4) if num_k > 1 else 0
    vmem_needed = 2 * in_block + 2 * out_block + scratch_b
    vmem_limit = int(min(vmem_cap,
                         max(32 * 1024 * 1024, vmem_needed + 8 * 1024 * 1024)))

    out = pl.pallas_call(
        kernel,
        out_shape=jax.ShapeDtypeStruct((n, 2, c), x.dtype),
        grid_spec=pltpu.PrefetchScalarGridSpec(
            num_scalar_prefetch=0,
            grid=(num_n, num_c, num_k),
            in_specs=[pl.BlockSpec((n_tile, c_tile, hw_tile),
                                   lambda b, i, k: (b, i, k))],
            out_specs=pl.BlockSpec((n_tile, 2, c_tile), lambda b, i, k: (b, 0, i)),
            scratch_shapes=scratch_shapes,
        ),
        compiler_params=pltpu.CompilerParams(
            dimension_semantics=("parallel", "parallel", "arbitrary"),
            vmem_limit_bytes=vmem_limit,
        ),
    )(x_flat)

    # (N, 2, C): row 0 = avg channels, row 1 = max channels -> flattening gives
    # exactly torch.cat([avg, max], dim=1) in (N, 2C, 1, 1).
    return out.reshape(n, 2 * c, 1, 1)


# ----------------------------------------------------------------------------
# Self-test
# ----------------------------------------------------------------------------
def _reference(x):
    return jnp.concatenate(
        [jnp.mean(x, axis=(2, 3), keepdims=True),
         jnp.max(x, axis=(2, 3), keepdims=True)],
        axis=1,
    )


def _check(x, atol=1e-5, rtol=1e-5):
    out = jax.block_until_ready(adaptive_concat_pool2d(x))
    ref = _reference(x)
    assert out.shape == (x.shape[0], 2 * x.shape[1], 1, 1), out.shape
    assert jnp.allclose(out, ref, atol=atol, rtol=rtol), (
        "max abs err = %r" % float(jnp.max(jnp.abs(out - ref))))


if __name__ == "__main__":
    key = jax.random.PRNGKey(0)
    k1, k2, k3, k4 = jax.random.split(key, 4)

    # Primary small case (matches the module's expected usage).
    _check(jax.random.normal(k1, (2, 4, 16, 16), dtype=jnp.float32))

    # n_tile > 1 batching with non-128-aligned C / HW (full-dim blocks).
    _check(jax.random.normal(k2, (8, 3, 7, 7), dtype=jnp.float32))

    # N == 1 with 128-aligned C: exercises the >=2-parallel-steps C split.
    _check(jax.random.normal(k3, (1, 256, 16, 16), dtype=jnp.float32))

    # Larger H*W: exercises the HW-tiled accumulate path with a masked ragged tile.
    _check(jax.random.normal(k4, (1, 16, 320, 240), dtype=jnp.float32),
           atol=1e-4, rtol=1e-5)

    print("KERNEL_OK")
</pallas_src>

<mosaic_0001>
module attributes {stable_mosaic.version = 11 : i64} {
  func.func @_pool_single_pass_kernel(%arg0: i32, %arg1: i32, %arg2: i32, %arg3: memref<1x4x256xf32, #tpu.memory_space<vmem>>, %arg4: memref<1x2x4xf32, #tpu.memory_space<vmem>>) attributes {dimension_semantics = [#tpu.dimension_semantics<parallel>, #tpu.dimension_semantics<parallel>, #tpu.dimension_semantics<arbitrary>], iteration_bounds = array<i64: 2, 1, 1>, scalar_prefetch = 0 : i64, scratch_operands = 0 : i64, tpu.core_type = #tpu.core_type<tc>, window_params = [{transform_indices = @transform_0, window_bounds = array<i64: 1, 4, 256>}, {transform_indices = @transform_1, window_bounds = array<i64: 1, 2, 4>}]} {
    %c0 = arith.constant 0 : index
    %c0_0 = arith.constant 0 : index
    %c0_1 = arith.constant 0 : index
    %0 = vector.load %arg3[%c0, %c0_0, %c0_1] : memref<1x4x256xf32, #tpu.memory_space<vmem>>, vector<1x4x256xf32>
    %cst = arith.constant dense<0.000000e+00> : vector<1x4xf32>
    %1 = vector.multi_reduction <add>, %0, %cst [2] : vector<1x4x256xf32> to vector<1x4xf32>
    %cst_2 = arith.constant 3.906250e-03 : f32
    %2 = vector.broadcast %cst_2 : f32 to vector<1x4xf32>
    %3 = arith.mulf %1, %2 : vector<1x4xf32>
    %cst_3 = arith.constant dense<0xFF800000> : vector<1x4xf32>
    %4 = vector.multi_reduction <maximumf>, %0, %cst_3 [2] : vector<1x4x256xf32> to vector<1x4xf32>
    %c0_4 = arith.constant 0 : index
    %c0_5 = arith.constant 0 : index
    %c0_6 = arith.constant 0 : index
    %5 = vector.load %arg4[%c0_4, %c0_5, %c0_6] : memref<1x2x4xf32, #tpu.memory_space<vmem>>, vector<1x1x4xf32>
    %6 = vector.shape_cast %5 : vector<1x1x4xf32> to vector<1x4xf32>
    %7 = vector.shape_cast %3 : vector<1x4xf32> to vector<1x1x4xf32>
    tpu.vector_store %arg4[%c0_4, %c0_5, %c0_6], %7 {strides = array<i32>} : memref<1x2x4xf32, #tpu.memory_space<vmem>>, vector<1x1x4xf32>,
    %c0_7 = arith.constant 0 : index
    %c1 = arith.constant 1 : index
    %c0_8 = arith.constant 0 : index
    %8 = vector.load %arg4[%c0_7, %c1, %c0_8] : memref<1x2x4xf32, #tpu.memory_space<vmem>>, vector<1x1x4xf32>
    %9 = vector.shape_cast %8 : vector<1x1x4xf32> to vector<1x4xf32>
    %10 = vector.shape_cast %4 : vector<1x4xf32> to vector<1x1x4xf32>
    tpu.vector_store %arg4[%c0_7, %c1, %c0_8], %10 {strides = array<i32>} : memref<1x2x4xf32, #tpu.memory_space<vmem>>, vector<1x1x4xf32>,
    return
  }
  func.func @transform_0(%arg0: i32, %arg1: i32, %arg2: i32) -> (i32, i32, i32) {
    %c0_i32 = arith.constant 0 : i32
    return %arg0, %arg1, %arg2 : i32, i32, i32
  }
  func.func @transform_1(%arg0: i32, %arg1: i32, %arg2: i32) -> (i32, i32, i32) {
    %c0_i32 = arith.constant 0 : i32
    %c0_i32_0 = arith.constant 0 : i32
    return %arg0, %c0_i32, %arg1 : i32, i32, i32
  }
}

</mosaic_0001>

<llo_original>
// kernel: tpu_custom_call.1
$region0: #{tpu_custom_call.1}
  #allocation0 [shape = 'u32[]', space=smem, size = 0x4, offset = 0x4, fixed_abs, tag = 'smem constant byte address 0x4 - core index']
  #allocation1 [shape = 'u32[144,128]{1,0:T(1,128)}', space=vmem, size = 0x12000, scoped, tag = 'internal scratch']
  %s0 = inlined_call_operand.hbm [shape: f32[2,4,256], index: 0, kind: input, shape index: {}]
  %s1 = inlined_call_operand.hbm [shape: f32[2,2,4], index: 1, kind: output, shape index: {}]
  %s2 = sld [smem:[#allocation0]]
  $region41: #{tpu_custom_call.1} parent=0
    _
  %s4 = ssub.s32 1, %s2
  %s5 = scalar_select 0, %s4, %s2
  $region1: #{tpu_custom_call.1} parent=0
    #allocation2 [shape = 'u8[8192]{0}', space=vmem, size = 0x2000, scoped, tag = 'input window, operand 0']
    #allocation3 [shape = 's32[2]{0}', space=sflag, size = 0x8, scoped, tag = 'scoped memory for tpu_custom_call.1']
    #allocation4 [shape = 's32[2]{0}', space=sflag, size = 0x8, scoped, tag = 'scoped memory for tpu_custom_call.1']
    #allocation5 [shape = 'u8[2048]{0}', space=vmem, size = 0x800, scoped, tag = 'output window, operand 0']
    %6 = vsyncpa [#allocation3], 0
    %s7 = scalar_lea.sflag [#allocation3], 1
    %8 = vsyncpa %s7, 0
    %9 = vsyncpa [#allocation4], 0
    %s10 = scalar_lea.sflag [#allocation4], 1
    %11 = vsyncpa %s10, 0
    loop: start=0, step=1, limit=4
    $region2: #{tpu_custom_call.1} parent=1 // loop_pre_header
      _
    $region3: #{tpu_custom_call.1} parent=1 // loop_header
      %s13 = sphi 0, %s17
      %p14 = scmp.ge.s32.totalorder %s13, 4
      %s20 = sphi 0, %s39
      %s21 = sphi 0, %s35
      %s22 = sphi 0, %s31
      %s23 = sphi 0, %s20
      %s24 = sphi 0, %s21
      %s25 = sphi 0, %s22
      %s26 = sphi 0, %s23
      %s27 = sphi 0, %s24
      %s28 = sphi 0, %s25
      %s46 = sphi 0, %s48
      %s49 = sphi 0, %s46
      %s50 = sphi 0, %s49
      %s66 = sphi 0, %s50
      %s74 = sphi 0, %s76
      %s77 = sphi 0, %s74
      %s78 = sphi 0, %s77
      %s94 = sphi 0, %s78
    $region4: #{tpu_custom_call.1} parent=1 // loop_header_branch
      %16 = sbr.rel (%p14) target = $region8
    $region5: #{tpu_custom_call.1} parent=1 // loop_body
      %s18 = ssub.s32 %s13, 1
      %s19 = ssub.s32 %s13, 2
      %s29 = sadd.s32 1, %s22
      %p30 = scmp.ge.s32.totalorder %s29, 1
      %s31 = scalar_select %p30, 0, %s29
      %s32 = sadd.s32 1, %s21
      %s33 = scalar_select %p30, %s32, %s21
      %p34 = scmp.ge.s32.totalorder %s33, 1
      %s35 = scalar_select %p34, 0, %s33
      %s36 = sadd.s32 1, %s20
      %s37 = scalar_select %p34, %s36, %s20
      %p38 = scmp.ge.s32.totalorder %s37, 2
      %s39 = scalar_select %p38, 0, %s37
      %s40 = ssub.s32 %s20, %s39
      %s41 = ssub.s32 %s21, %s35
      %s42 = sor.u32 %s40, %s41
      %s43 = ssub.s32 %s22, %s31
      %s44 = sor.u32 %s42, %s43
      %p45 = scmp.eq.s32.totalorder %s44, 0
      %s47 = sadd.s32 %s46, 1
      %s48 = scalar_select %p45, %s46, %s47
      %p51 = pneg %p45
      %p52 = scmp.eq.s32.totalorder %s13, 1
      %p53 = por %p51, %p52
      %p54 = scmp.ne.s32.totalorder %s46, %s49
      %p55 = scmp.eq.s32.totalorder %s13, 0
      %p56 = por %p54, %p55
      %p57 = scmp.ne.s32.totalorder %s46, %s49
      %p58 = scmp.eq.s32.totalorder %s18, 1
      %p59 = por %p57, %p58
      %p60 = scmp.ne.s32.totalorder %s49, %s50
      %p61 = scmp.eq.s32.totalorder %s18, 0
      %p62 = por %p60, %p61
      %p63 = scmp.ne.s32.totalorder %s49, %s50
      %p64 = scmp.eq.s32.totalorder %s19, 1
      %p65 = por %p63, %p64
      %p67 = scmp.ne.s32.totalorder %s50, %s66
      %p68 = scmp.eq.s32.totalorder %s19, 0
      %p69 = por %p67, %p68
      %s70 = ssub.s32 %s20, %s39
      %s71 = ssub.s32 %s21, %s35
      %s72 = sor.u32 %s70, %s71
      %p73 = scmp.eq.s32.totalorder %s72, 0
      %s75 = sadd.s32 %s74, 1
      %s76 = scalar_select %p73, %s74, %s75
      %p79 = pneg %p73
      %p80 = scmp.eq.s32.totalorder %s13, 1
      %p81 = por %p79, %p80
      %p82 = scmp.ne.s32.totalorder %s74, %s77
      %p83 = scmp.eq.s32.totalorder %s13, 0
      %p84 = por %p82, %p83
      %p85 = scmp.ne.s32.totalorder %s74, %s77
      %p86 = scmp.eq.s32.totalorder %s18, 1
      %p87 = por %p85, %p86
      %p88 = scmp.ne.s32.totalorder %s77, %s78
      %p89 = scmp.eq.s32.totalorder %s18, 0
      %p90 = por %p88, %p89
      %p91 = scmp.ne.s32.totalorder %s77, %s78
      %p92 = scmp.eq.s32.totalorder %s19, 1
      %p93 = por %p91, %p92
      %p95 = scmp.ne.s32.totalorder %s78, %s94
      %p96 = scmp.eq.s32.totalorder %s19, 0
      %p97 = por %p95, %p96
      %p98 = scmp.le.s32.totalorder 1, %s13
      %p99 = scmp.lt.s32.totalorder %s13, 3
      %p100 = pnand %p98, %p99
      %p101 = pneg %p100
      // Predicated region
      $region9: #{tpu_custom_call.1} parent=5 // pred_check
        _
      $region10: #{tpu_custom_call.1} parent=5 // pred_check_branch
        %103 = sbr.rel (%p100) target = $region12
      $region11: #{tpu_custom_call.1} parent=5 // pred_region
        %s104 = ssub.s32 %s13, 1
      $region12: #{tpu_custom_call.1} parent=5 // pred_fallthru
        _
      %p105 = scmp.lt.s32.totalorder %s13, 2
      // Predicated region
      $region13: #{tpu_custom_call.1} parent=5 // pred_check
        %p106 = pneg %p105
      $region14: #{tpu_custom_call.1} parent=5 // pred_check_branch
        %108 = sbr.rel (%p106) target = $region16
      $region15: #{tpu_custom_call.1} parent=5 // pred_region
        // Predicated region
        $region17: #{tpu_custom_call.1} parent=15 // pred_check
          %p109 = pneg %p56
        $region18: #{tpu_custom_call.1} parent=15 // pred_check_branch
          %111 = sbr.rel (%p109) target = $region20
        $region19: #{tpu_custom_call.1} parent=15 // pred_region
          %s112 = sand.u32 %s46, 1
          %s113 = scalar_lea.sflag [#allocation3], %s112
          %s114 = sand.u32 %s46, 1
          %s115 = smul.addr %s114, 8
          %s116 = scalar_lea.vmem [#allocation2], %s115
          %s117 = smul.u32 2, %s22
          %s119 = ssub.s32 128, 128
          %120 = vsyncadd %s113, %s119
          %s121 = smul.addr %s21, 2
          %s122 = sadd.s32 %s117, %s121
          %s123 = smul.addr %s20, 2
          %s124 = sadd.s32 %s122, %s123
          %s125 = smul.addr %s124, 64
          %s126 = scalar_lea.hbm %s0, %s125
          %s128 = sshll.u32 %s116, 4
          %s129 = int_to_ptr.vmem [resolvable:$true] %s128
          %131 = dma.hbm_to_vmem [thread:$0]  %s126, 128, %s129, %s113
        $region20: #{tpu_custom_call.1} parent=15 // pred_fallthru
          _
      $region16: #{tpu_custom_call.1} parent=5 // pred_fallthru
        _
      %p132 = scmp.le.s32.totalorder 1, %s13
      %p133 = scmp.lt.s32.totalorder %s13, 3
      %p134 = pnand %p132, %p133
      %p135 = pneg %p134
      // Predicated region
      $region21: #{tpu_custom_call.1} parent=5 // pred_check
        _
      $region22: #{tpu_custom_call.1} parent=5 // pred_check_branch
        %137 = sbr.rel (%p134) target = $region24
      $region23: #{tpu_custom_call.1} parent=5 // pred_region
        %s138 = ssub.s32 %s13, 1
        %s139 = sand.u32 %s49, 1
        %s140 = scalar_lea.sflag [#allocation3], %s139
        %s141 = sand.u32 %s49, 1
        %s142 = smul.addr %s141, 8
        %s143 = scalar_lea.vmem [#allocation2], %s142
        // Predicated region
        $region25: #{tpu_custom_call.1} parent=23 // pred_check
          %p144 = pneg %p62
        $region26: #{tpu_custom_call.1} parent=23 // pred_check_branch
          %146 = sbr.rel (%p144) target = $region28
        $region27: #{tpu_custom_call.1} parent=23 // pred_region
          %147 = dma.done %s140, 128
        $region28: #{tpu_custom_call.1} parent=23 // pred_fallthru
          _
        %s148 = sand.u32 %s49, 1
        %s149 = scalar_lea.sflag [#allocation3], %s148
        %s150 = sand.u32 %s49, 1
        %s151 = smul.addr %s150, 8
        %s152 = scalar_lea.vmem [#allocation2], %s151
        %p153 = pneg %p62
        %p154 = pneg %p59
        %p155 = pneg %p90
        %p156 = pneg %p87
        %s157 = sand.u32 %s77, 1
        %s158 = scalar_lea.sflag [#allocation4], %s157
        %s159 = sand.u32 %s77, 1
        %s160 = smul.addr %s159, 2
        %s161 = scalar_lea.vmem [#allocation5], %s160
        %s162 = smul.u32 2, %s25
        %v163 = vld [vmem:[%s143] sm:$0xff]
        %v165 = vcombine.high %v163, %v163
        %vm167 = vcmask 1043456
        %v168 = vsel %vm167, %v163, 0.0
        %v169 = vsel %vm167, %v165, 0.0
        %v170 = vadd.f32 %v168, %v169
        %171 = vadd.xlane.f32.xlu0 %v170
        %v172 = vpop.xlane.xlu0 %171
        %v173 = vmul.f32 %v172, 0.00390625
        %v174 = vsel %vm167, %v163, -inf
        %v175 = vsel %vm167, %v165, -inf
        %v176 = vmax.f32 %v174, %v175
        %177 = vmax.xlane.f32.xlu0 %v176
        %v178 = vpop.xlane.xlu0 %177
        %v180 = vlaneseq
        %v181 = vand.u32 %v180, 127
        %v182 = vlaneseq
        %v183 = vshrl.u32 %v182, 7
        %v184 = vsub.s32 %v181, %v183
        %v185 = vrot.slane %v173, %v184
        %vm187 = vcmask 24576
        %188 = vst.msk [vmem:[%s161] sm:$0x1] %vm187, %v185
        %v190 = vlaneseq
        %v191 = vshrl.u32 %v190, 7
        %v192 = vsub.s32 %v181, %v191
        %v193 = vrot.slane %v178, %v192
        %195 = vst.msk [vmem:[%s161 + $0x1] sm:$0x1] %vm187, %v193
        %s196 = sand.u32 %s77, 1
        %s197 = scalar_lea.sflag [#allocation4], %s196
        %s198 = sand.u32 %s77, 1
        %s199 = smul.addr %s198, 2
        %s200 = scalar_lea.vmem [#allocation5], %s199
        // Predicated region
        $region29: #{tpu_custom_call.1} parent=23 // pred_check
          %p201 = pneg %p87
        $region30: #{tpu_custom_call.1} parent=23 // pred_check_branch
          %203 = sbr.rel (%p201) target = $region32
        $region31: #{tpu_custom_call.1} parent=23 // pred_region
          %s205 = ssub.s32 32, 32
          %206 = vsyncadd %s197, %s205
          %s207 = sadd.s32 %s24, %s23
          %s208 = smul.addr %s207, 32
          %s209 = scalar_lea.hbm %s1, %s208
          %s211 = sshll.u32 %s200, 4
          %s212 = int_to_ptr.vmem [resolvable:$true] %s211
          %214 = dma.vmem_to_hbm [thread:$0]  %s212, 32, %s209, %s197
        $region32: #{tpu_custom_call.1} parent=23 // pred_fallthru
          _
      $region24: #{tpu_custom_call.1} parent=5 // pred_fallthru
        _
      %p215 = scmp.le.s32.totalorder 2, %s13
      // Predicated region
      $region33: #{tpu_custom_call.1} parent=5 // pred_check
        %p216 = pneg %p215
      $region34: #{tpu_custom_call.1} parent=5 // pred_check_branch
        %218 = sbr.rel (%p216) target = $region36
      $region35: #{tpu_custom_call.1} parent=5 // pred_region
        %s219 = ssub.s32 %s13, 2
        // Predicated region
        $region37: #{tpu_custom_call.1} parent=35 // pred_check
          %p220 = pneg %p93
        $region38: #{tpu_custom_call.1} parent=35 // pred_check_branch
          %222 = sbr.rel (%p220) target = $region40
        $region39: #{tpu_custom_call.1} parent=35 // pred_region
          %s223 = sand.u32 %s78, 1
          %s224 = scalar_lea.sflag [#allocation4], %s223
          %s225 = sand.u32 %s78, 1
          %s226 = smul.addr %s225, 2
          %s227 = scalar_lea.vmem [#allocation5], %s226
          %228 = dma.done %s224, 32
        $region40: #{tpu_custom_call.1} parent=35 // pred_fallthru
          _
      $region36: #{tpu_custom_call.1} parent=5 // pred_fallthru
        _
    $region6: #{tpu_custom_call.1} parent=1 // loop_footer
      %s17 = sadd.s32 1, %s13
    $region7: #{tpu_custom_call.1} parent=1 // loop_footer_branch
      %12 = sbr.rel target = $region3
    $region8: #{tpu_custom_call.1} parent=1 // loop_exit
      _
    %229 = vsyncpa [#allocation3], 1
    %s230 = scalar_lea.sflag [#allocation3], 1
    %231 = vsyncpa %s230, 1
    %232 = vsyncpa [#allocation4], 1
    %s233 = scalar_lea.sflag [#allocation4], 1
    %234 = vsyncpa %s233, 1

</llo_original>
